<compile_context>
chip_gen: v7x
topology: tpu7x:2x2x1
jax: 0.10.0
libtpu: 0.0.40
codegen_flags: <defaults>
</compile_context>

<pallas_src>
import jax
import jax.numpy as jnp
from jax.experimental import pallas as pl
from jax.experimental.pallas import tpu as pltpu

IN_FEATURES = 768  # CLIP embedding width, fixed by the module


def _round_up(x, m):
    return (x + m - 1) // m * m


def _sublane(dtype):
    # Native sublane packing: 8 rows for 4-byte, 16 for 2-byte, 32 for 1-byte.
    return max(8, 32 // jnp.dtype(dtype).itemsize)


def clip_embedder_kernel(x_ref, w_ref, b_ref, o_ref):
    # x_ref: (TM, K), w_ref: (K, TN), b_ref: (1, TN), o_ref: (TM, TN)
    acc = jnp.dot(x_ref[...], w_ref[...], preferred_element_type=jnp.float32)
    o_ref[...] = (acc + b_ref[...].astype(jnp.float32)).astype(o_ref.dtype)


def prepare_clip_embedder_params(w, b, param_dtype=None):
    """One-time (init/cache-time) parameter prep.

    Pads weight (768, hidden) and bias (hidden,) to a lane-dense width that is
    a multiple of 128 so the kernel's stores are unmasked `vst`, and optionally
    casts to a narrower dtype (bf16).  Padded columns are zero, so the sliced
    output is exact.  Do this ONCE, not on every forward call.

    Returns (w_padded (768, O_pad), b_padded (1, O_pad), hidden_size).
    """
    K, O = w.shape
    if param_dtype is not None:
        w = w.astype(param_dtype)
        b = b.astype(param_dtype)
    O_pad = _round_up(O, 128)
    if O_pad != O:
        w = jnp.pad(w, ((0, 0), (0, O_pad - O)))
        b = jnp.pad(b, (0, O_pad - O))
    return w, b.reshape(1, O_pad), O


def clip_embedder(embeddings, w_p, b_p, out_features, *,
                  tile_m=None, tile_n=None, compute_dtype=None,
                  out_dtype=None):
    """embeddings: (..., 768); w_p/b_p from prepare_clip_embedder_params."""
    orig_shape = embeddings.shape
    K, O_pad = w_p.shape
    assert orig_shape[-1] == K, "last dim of embeddings must match weight rows"

    if out_dtype is None:
        out_dtype = embeddings.dtype
    if compute_dtype is not None:
        embeddings = embeddings.astype(compute_dtype)

    # Flatten all leading dims into one M axis; no padding / HBM copy of x.
    x2d = embeddings.reshape(-1, K)
    M = x2d.shape[0]

    x_item = jnp.dtype(x2d.dtype).itemsize
    w_item = jnp.dtype(w_p.dtype).itemsize
    b_item = jnp.dtype(b_p.dtype).itemsize
    o_item = jnp.dtype(out_dtype).itemsize
    sub = _sublane(x2d.dtype)

    # ---- N (output-feature) tiling: keep resident weight under ~12 MB ------
    if tile_n is None:
        if K * O_pad * w_item <= 12 * 1024 * 1024:
            TN = O_pad                     # weight fully resident
        else:
            TN = 512
            while O_pad % TN:              # O_pad % 128 == 0 -> terminates
                TN //= 2
    else:
        TN = min(tile_n, O_pad)
        assert TN % 128 == 0 and O_pad % TN == 0
    grid_n = O_pad // TN

    # ---- M (row) tiling ----------------------------------------------------
    if tile_m is None:
        tile_m = 1024 if O_pad <= 1024 else 512
    TM = min(_round_up(tile_m, sub), _round_up(M, sub))
    # v7x has 2 TensorCores; make sure the "parallel" M axis has >= 2 steps.
    while pl.cdiv(M, TM) < 2 and TM > sub:
        TM = max(sub, _round_up(TM // 2, sub))
    grid_m = pl.cdiv(M, TM)                # ragged last block handled by mask

    # ---- specs: weight/bias single-buffered when grid-invariant ------------
    if grid_n == 1:
        w_spec = pl.BlockSpec((K, TN), lambda i, j: (0, j),
                              pipeline_mode=pl.Buffered(1))
        b_spec = pl.BlockSpec((1, TN), lambda i, j: (0, j),
                              pipeline_mode=pl.Buffered(1))
        w_bufs = 1
    else:
        w_spec = pl.BlockSpec((K, TN), lambda i, j: (0, j))
        b_spec = pl.BlockSpec((1, TN), lambda i, j: (0, j))
        w_bufs = 2

    # Explicit VMEM budget: 2*x_tile + W bufs + b bufs + 2*out_tile + 25%.
    vmem_bytes = (2 * TM * K * x_item
                  + w_bufs * K * TN * w_item
                  + w_bufs * TN * b_item
                  + 2 * TM * TN * o_item)
    vmem_limit = int(min(max(vmem_bytes * 1.25, 32 * 1024 * 1024),
                         64 * 1024 * 1024))

    cost = pl.CostEstimate(
        flops=2 * M * K * O_pad,
        transcendentals=0,
        bytes_accessed=(M * K * x_item + K * O_pad * w_item
                        + O_pad * b_item + M * O_pad * o_item))

    out_p = pl.pallas_call(
        clip_embedder_kernel,
        out_shape=jax.ShapeDtypeStruct((M, O_pad), out_dtype),
        grid_spec=pltpu.PrefetchScalarGridSpec(
            num_scalar_prefetch=0,
            grid=(grid_m, grid_n),
            in_specs=[
                pl.BlockSpec((TM, K), lambda i, j: (i, 0)),  # x tile
                w_spec,                                      # weight tile
                b_spec,                                      # bias tile
            ],
            out_specs=pl.BlockSpec((TM, TN), lambda i, j: (i, j)),
        ),
        compiler_params=pltpu.CompilerParams(
            dimension_semantics=("parallel", "parallel"),
            vmem_limit_bytes=vmem_limit),
        cost_estimate=cost,
    )(x2d, w_p, b_p)

    out = out_p[:, :out_features]
    return out.reshape(*orig_shape[:-1], out_features)


def clip_embedder_ref(embeddings, w, b):
    """Pure-JAX reference mirroring the PyTorch forward: Linear(768, hidden)."""
    return embeddings @ w + b


if __name__ == "__main__":
    # Small shapes consistent with the module: batch=2, seq=8, CLIP width 768,
    # hidden_size=32.
    B, S = 2, 8
    hidden_size = 32

    key = jax.random.PRNGKey(0)
    kx, kw, kb = jax.random.split(key, 3)

    emb = jax.random.normal(kx, (B, S, IN_FEATURES), dtype=jnp.float32)
    # Weight stored as (in, out); equivalent to PyTorch's (out, in) transposed.
    w = 0.02 * jax.random.normal(kw, (IN_FEATURES, hidden_size), jnp.float32)
    b = 0.01 * jax.random.normal(kb, (hidden_size,), jnp.float32)

    # One-time parameter prep (lane-dense padding happens here, not per call).
    w_p, b_p, O = prepare_clip_embedder_params(w, b)

    out = clip_embedder(emb, w_p, b_p, O)
    out = jax.block_until_ready(out)
    ref = clip_embedder_ref(emb, w, b)
    assert out.shape == (B, S, hidden_size)
    assert jnp.allclose(out, ref, atol=1e-4, rtol=1e-4), float(
        jnp.max(jnp.abs(out - ref)))

    # Ragged-M path: M=15 is not a multiple of the tile -> masked last block.
    emb2 = jax.random.normal(kx, (3, 5, IN_FEATURES), dtype=jnp.float32)
    out2 = jax.block_until_ready(clip_embedder(emb2, w_p, b_p, O))
    ref2 = clip_embedder_ref(emb2, w, b)
    assert out2.shape == (3, 5, hidden_size)
    assert jnp.allclose(out2, ref2, atol=1e-4, rtol=1e-4), float(
        jnp.max(jnp.abs(out2 - ref2)))

    print("KERNEL_OK")
</pallas_src>

<mosaic_0001>
module attributes {stable_mosaic.version = 11 : i64} {
  func.func @clip_embedder_kernel(%arg0: i32, %arg1: i32, %arg2: memref<8x768xf32, #tpu.memory_space<vmem>>, %arg3: memref<768x128xf32, #tpu.memory_space<vmem>>, %arg4: memref<1x128xf32, #tpu.memory_space<vmem>>, %arg5: memref<8x128xf32, #tpu.memory_space<vmem>>) attributes {dimension_semantics = [#tpu.dimension_semantics<parallel>, #tpu.dimension_semantics<parallel>], iteration_bounds = array<i64: 2, 1>, scalar_prefetch = 0 : i64, scratch_operands = 0 : i64, tpu.core_type = #tpu.core_type<tc>, window_params = [{transform_indices = @transform_0, window_bounds = array<i64: 8, 768>}, {pipeline_mode = #tpu.pipeline_mode<synchronous>, transform_indices = @transform_1, window_bounds = array<i64: 768, 128>}, {pipeline_mode = #tpu.pipeline_mode<synchronous>, transform_indices = @transform_2, window_bounds = array<i64: 1, 128>}, {transform_indices = @transform_3, window_bounds = array<i64: 8, 128>}]} {
    %c0 = arith.constant 0 : index
    %c0_0 = arith.constant 0 : index
    %0 = vector.load %arg2[%c0, %c0_0] : memref<8x768xf32, #tpu.memory_space<vmem>>, vector<8x768xf32>
    %c0_1 = arith.constant 0 : index
    %c0_2 = arith.constant 0 : index
    %1 = vector.load %arg3[%c0_1, %c0_2] : memref<768x128xf32, #tpu.memory_space<vmem>>, vector<768x128xf32>
    %cst = arith.constant dense<0.000000e+00> : vector<8x128xf32>
    %2 = tpu.matmul %0, %1, %cst {dimension_numbers = #tpu.dot_dimension_numbers<[1], [0], [0], [1], [0, 0, 1, 1], [], []>} : vector<8x768xf32>, vector<768x128xf32>, vector<8x128xf32> -> vector<8x128xf32>
    %c0_3 = arith.constant 0 : index
    %c0_4 = arith.constant 0 : index
    %3 = vector.load %arg4[%c0_3, %c0_4] : memref<1x128xf32, #tpu.memory_space<vmem>>, vector<1x128xf32>
    %4 = vector.broadcast %3 : vector<1x128xf32> to vector<8x128xf32>
    %5 = arith.addf %2, %4 : vector<8x128xf32>
    %c0_5 = arith.constant 0 : index
    %c0_6 = arith.constant 0 : index
    %6 = vector.load %arg5[%c0_5, %c0_6] : memref<8x128xf32, #tpu.memory_space<vmem>>, vector<8x128xf32>
    tpu.vector_store %arg5[%c0_5, %c0_6], %5 {strides = array<i32>} : memref<8x128xf32, #tpu.memory_space<vmem>>, vector<8x128xf32>,
    return
  }
  func.func @transform_0(%arg0: i32, %arg1: i32) -> (i32, i32) {
    %c0_i32 = arith.constant 0 : i32
    %c0_i32_0 = arith.constant 0 : i32
    return %arg0, %c0_i32 : i32, i32
  }
  func.func @transform_1(%arg0: i32, %arg1: i32) -> (i32, i32) {
    %c0_i32 = arith.constant 0 : i32
    %c0_i32_0 = arith.constant 0 : i32
    return %c0_i32, %arg1 : i32, i32
  }
  func.func @transform_2(%arg0: i32, %arg1: i32) -> (i32, i32) {
    %c0_i32 = arith.constant 0 : i32
    %c0_i32_0 = arith.constant 0 : i32
    return %c0_i32, %arg1 : i32, i32
  }
  func.func @transform_3(%arg0: i32, %arg1: i32) -> (i32, i32) {
    %c0_i32 = arith.constant 0 : i32
    return %arg0, %arg1 : i32, i32
  }
}

</mosaic_0001>

<llo_original>
// kernel: tpu_custom_call.1
$region0: #{tpu_custom_call.1}
  #allocation0 [shape = 'u32[]', space=smem, size = 0x4, offset = 0x4, fixed_abs, tag = 'smem constant byte address 0x4 - core index']
  #allocation1 [shape = 'u32[144,128]{1,0:T(1,128)}', space=vmem, size = 0x12000, scoped, tag = 'internal scratch']
  %s0 = inlined_call_operand.hbm [shape: f32[16,768], index: 0, kind: input, shape index: {}]
  %s1 = inlined_call_operand.hbm [shape: f32[768,128], index: 1, kind: input, shape index: {}]
  %s2 = inlined_call_operand.vmem [shape: f32[1,128], index: 2, kind: input, shape index: {}]
  %s3 = inlined_call_operand.hbm [shape: f32[16,128], index: 3, kind: output, shape index: {}]
  %s4 = sld [smem:[#allocation0]]
  $region53: #{tpu_custom_call.1} parent=0
    _
  %s6 = ssub.s32 1, %s4
  %s7 = scalar_select 0, %s6, %s4
  $region1: #{tpu_custom_call.1} parent=0
    #allocation2 [shape = 'u8[49152]{0}', space=vmem, size = 0xc000, scoped, tag = 'input window, operand 0']
    #allocation3 [shape = 's32[2]{0}', space=sflag, size = 0x8, scoped, tag = 'scoped memory for tpu_custom_call.1']
    #allocation4 [shape = 's32[2]{0}', space=sflag, size = 0x8, scoped, tag = 'scoped memory for tpu_custom_call.1']
    #allocation5 [shape = 'u8[393216]{0}', space=vmem, size = 0x60000, scoped, tag = 'input window, operand 1, single buffered']
    #allocation6 [shape = 's32[1]{0}', space=sflag, size = 0x4, scoped, tag = 'scoped memory for tpu_custom_call.1']
    #allocation7 [shape = 'u8[8192]{0}', space=vmem, size = 0x2000, scoped, tag = 'output window, operand 0']
    %8 = vsyncpa [#allocation3], 0
    %s9 = scalar_lea.sflag [#allocation3], 1
    %10 = vsyncpa %s9, 0
    %11 = vsyncpa [#allocation6], 0
    %12 = vsyncpa [#allocation4], 0
    %s13 = scalar_lea.sflag [#allocation4], 1
    %14 = vsyncpa %s13, 0
    loop: start=0, step=1, limit=4
    $region2: #{tpu_custom_call.1} parent=1 // loop_pre_header
      _
    $region3: #{tpu_custom_call.1} parent=1 // loop_header
      %s16 = sphi 0, %s20
      %p17 = scmp.ge.s32.totalorder %s16, 4
      %s23 = sphi 0, %s35
      %s24 = sphi 0, %s31
      %s25 = sphi 0, %s23
      %s26 = sphi 0, %s24
      %s27 = sphi 0, %s25
      %s28 = sphi 0, %s26
      %s38 = sphi 0, %s40
      %s41 = sphi 0, %s38
      %s42 = sphi 0, %s41
      %s58 = sphi 0, %s42
      %s64 = sphi 0, %s66
      %s67 = sphi 0, %s64
      %s68 = sphi 0, %s67
      %s84 = sphi 0, %s68
      %s90 = sphi 0, %s92
      %s93 = sphi 0, %s90
      %s94 = sphi 0, %s93
      %s110 = sphi 0, %s94
      %s118 = sphi 0, %s120
      %s121 = sphi 0, %s118
      %s122 = sphi 0, %s121
      %s138 = sphi 0, %s122
    $region4: #{tpu_custom_call.1} parent=1 // loop_header_branch
      %19 = sbr.rel (%p17) target = $region8
    $region5: #{tpu_custom_call.1} parent=1 // loop_body
      %s21 = ssub.s32 %s16, 1
      %s22 = ssub.s32 %s16, 2
      %s29 = sadd.s32 1, %s24
      %p30 = scmp.ge.s32.totalorder %s29, 1
      %s31 = scalar_select %p30, 0, %s29
      %s32 = sadd.s32 1, %s23
      %s33 = scalar_select %p30, %s32, %s23
      %p34 = scmp.ge.s32.totalorder %s33, 2
      %s35 = scalar_select %p34, 0, %s33
      %s36 = ssub.s32 %s23, %s35
      %p37 = scmp.eq.s32.totalorder %s36, 0
      %s39 = sadd.s32 %s38, 1
      %s40 = scalar_select %p37, %s38, %s39
      %p43 = pneg %p37
      %p44 = scmp.eq.s32.totalorder %s16, 1
      %p45 = por %p43, %p44
      %p46 = scmp.ne.s32.totalorder %s38, %s41
      %p47 = scmp.eq.s32.totalorder %s16, 0
      %p48 = por %p46, %p47
      %p49 = scmp.ne.s32.totalorder %s38, %s41
      %p50 = scmp.eq.s32.totalorder %s21, 1
      %p51 = por %p49, %p50
      %p52 = scmp.ne.s32.totalorder %s41, %s42
      %p53 = scmp.eq.s32.totalorder %s21, 0
      %p54 = por %p52, %p53
      %p55 = scmp.ne.s32.totalorder %s41, %s42
      %p56 = scmp.eq.s32.totalorder %s22, 1
      %p57 = por %p55, %p56
      %p59 = scmp.ne.s32.totalorder %s42, %s58
      %p60 = scmp.eq.s32.totalorder %s22, 0
      %p61 = por %p59, %p60
      %s62 = ssub.s32 %s24, %s31
      %p63 = scmp.eq.s32.totalorder %s62, 0
      %s65 = sadd.s32 %s64, 1
      %s66 = scalar_select %p63, %s64, %s65
      %p69 = pneg %p63
      %p70 = scmp.eq.s32.totalorder %s16, 1
      %p71 = por %p69, %p70
      %p72 = scmp.ne.s32.totalorder %s64, %s67
      %p73 = scmp.eq.s32.totalorder %s16, 0
      %p74 = por %p72, %p73
      %p75 = scmp.ne.s32.totalorder %s64, %s67
      %p76 = scmp.eq.s32.totalorder %s21, 1
      %p77 = por %p75, %p76
      %p78 = scmp.ne.s32.totalorder %s67, %s68
      %p79 = scmp.eq.s32.totalorder %s21, 0
      %p80 = por %p78, %p79
      %p81 = scmp.ne.s32.totalorder %s67, %s68
      %p82 = scmp.eq.s32.totalorder %s22, 1
      %p83 = por %p81, %p82
      %p85 = scmp.ne.s32.totalorder %s68, %s84
      %p86 = scmp.eq.s32.totalorder %s22, 0
      %p87 = por %p85, %p86
      %s88 = ssub.s32 %s24, %s31
      %p89 = scmp.eq.s32.totalorder %s88, 0
      %s91 = sadd.s32 %s90, 1
      %s92 = scalar_select %p89, %s90, %s91
      %p95 = pneg %p89
      %p96 = scmp.eq.s32.totalorder %s16, 1
      %p97 = por %p95, %p96
      %p98 = scmp.ne.s32.totalorder %s90, %s93
      %p99 = scmp.eq.s32.totalorder %s16, 0
      %p100 = por %p98, %p99
      %p101 = scmp.ne.s32.totalorder %s90, %s93
      %p102 = scmp.eq.s32.totalorder %s21, 1
      %p103 = por %p101, %p102
      %p104 = scmp.ne.s32.totalorder %s93, %s94
      %p105 = scmp.eq.s32.totalorder %s21, 0
      %p106 = por %p104, %p105
      %p107 = scmp.ne.s32.totalorder %s93, %s94
      %p108 = scmp.eq.s32.totalorder %s22, 1
      %p109 = por %p107, %p108
      %p111 = scmp.ne.s32.totalorder %s94, %s110
      %p112 = scmp.eq.s32.totalorder %s22, 0
      %p113 = por %p111, %p112
      %s114 = ssub.s32 %s23, %s35
      %s115 = ssub.s32 %s24, %s31
      %s116 = sor.u32 %s114, %s115
      %p117 = scmp.eq.s32.totalorder %s116, 0
      %s119 = sadd.s32 %s118, 1
      %s120 = scalar_select %p117, %s118, %s119
      %p123 = pneg %p117
      %p124 = scmp.eq.s32.totalorder %s16, 1
      %p125 = por %p123, %p124
      %p126 = scmp.ne.s32.totalorder %s118, %s121
      %p127 = scmp.eq.s32.totalorder %s16, 0
      %p128 = por %p126, %p127
      %p129 = scmp.ne.s32.totalorder %s118, %s121
      %p130 = scmp.eq.s32.totalorder %s21, 1
      %p131 = por %p129, %p130
      %p132 = scmp.ne.s32.totalorder %s121, %s122
      %p133 = scmp.eq.s32.totalorder %s21, 0
      %p134 = por %p132, %p133
      %p135 = scmp.ne.s32.totalorder %s121, %s122
      %p136 = scmp.eq.s32.totalorder %s22, 1
      %p137 = por %p135, %p136
      %p139 = scmp.ne.s32.totalorder %s122, %s138
      %p140 = scmp.eq.s32.totalorder %s22, 0
      %p141 = por %p139, %p140
      %p142 = scmp.le.s32.totalorder 1, %s16
      %p143 = scmp.lt.s32.totalorder %s16, 3
      %p144 = pnand %p142, %p143
      %p145 = pneg %p144
      // Predicated region
      $region9: #{tpu_custom_call.1} parent=5 // pred_check
        _
      $region10: #{tpu_custom_call.1} parent=5 // pred_check_branch
        %147 = sbr.rel (%p144) target = $region12
      $region11: #{tpu_custom_call.1} parent=5 // pred_region
        %s148 = ssub.s32 %s16, 1
        // Predicated region
        $region13: #{tpu_custom_call.1} parent=11 // pred_check
          %p149 = pneg %p80
        $region14: #{tpu_custom_call.1} parent=11 // pred_check_branch
          %151 = sbr.rel (%p149) target = $region16
        $region15: #{tpu_custom_call.1} parent=11 // pred_region
          %s153 = ssub.s32 12288, 12288
          %154 = vsyncadd [#allocation6], %s153
          %s155 = smul.addr %s26, 128
          %s156 = scalar_lea.hbm %s1, %s155
          %s157 = sshll.u32 [#allocation5], 4
          %s158 = int_to_ptr.vmem [resolvable:$true] %s157
          %163 = dma.hbm_to_vmem [thread:$0]  %s156, 12288, %s158, [#allocation6], 128, 128, 8
        $region16: #{tpu_custom_call.1} parent=11 // pred_fallthru
          _
        // Predicated region
        $region17: #{tpu_custom_call.1} parent=11 // pred_check
          %p164 = pneg %p106
        $region18: #{tpu_custom_call.1} parent=11 // pred_check_branch
          %166 = sbr.rel (%p164) target = $region20
        $region19: #{tpu_custom_call.1} parent=11 // pred_region
          %p167 = scmp.lt.s32.totalorder %s26, 0
          %s168 = scalar_select %p167, %s26, 0
          %s169 = scalar_lea.vmem %s2, %s168
        $region20: #{tpu_custom_call.1} parent=11 // pred_fallthru
          _
      $region12: #{tpu_custom_call.1} parent=5 // pred_fallthru
        _
      %p170 = scmp.lt.s32.totalorder %s16, 2
      // Predicated region
      $region21: #{tpu_custom_call.1} parent=5 // pred_check
        %p171 = pneg %p170
      $region22: #{tpu_custom_call.1} parent=5 // pred_check_branch
        %173 = sbr.rel (%p171) target = $region24
      $region23: #{tpu_custom_call.1} parent=5 // pred_region
        // Predicated region
        $region25: #{tpu_custom_call.1} parent=23 // pred_check
          %p174 = pneg %p48
        $region26: #{tpu_custom_call.1} parent=23 // pred_check_branch
          %176 = sbr.rel (%p174) target = $region28
        $region27: #{tpu_custom_call.1} parent=23 // pred_region
          %s177 = sand.u32 %s38, 1
          %s178 = scalar_lea.sflag [#allocation3], %s177
          %s179 = sand.u32 %s38, 1
          %s180 = smul.addr %s179, 48
          %s181 = scalar_lea.vmem [#allocation2], %s180
          %s183 = ssub.s32 768, 768
          %184 = vsyncadd %s178, %s183
          %s185 = smul.addr %s23, 6
          %s186 = smul.addr %s185, 128
          %s187 = scalar_lea.hbm %s0, %s186
          %s189 = sshll.u32 %s181, 4
          %s190 = int_to_ptr.vmem [resolvable:$true] %s189
          %192 = dma.hbm_to_vmem [thread:$0]  %s187, 768, %s190, %s178
        $region28: #{tpu_custom_call.1} parent=23 // pred_fallthru
          _
      $region24: #{tpu_custom_call.1} parent=5 // pred_fallthru
        _
      %p193 = scmp.le.s32.totalorder 1, %s16
      %p194 = scmp.lt.s32.totalorder %s16, 3
      %p195 = pnand %p193, %p194
      %p196 = pneg %p195
      // Predicated region
      $region29: #{tpu_custom_call.1} parent=5 // pred_check
        _
      $region30: #{tpu_custom_call.1} parent=5 // pred_check_branch
        %198 = sbr.rel (%p195) target = $region32
      $region31: #{tpu_custom_call.1} parent=5 // pred_region
        %s199 = ssub.s32 %s16, 1
        %s200 = sand.u32 %s41, 1
        %s201 = scalar_lea.sflag [#allocation3], %s200
        %s202 = sand.u32 %s41, 1
        %s203 = smul.addr %s202, 48
        %s204 = scalar_lea.vmem [#allocation2], %s203
        // Predicated region
        $region33: #{tpu_custom_call.1} parent=31 // pred_check
          %p205 = pneg %p54
        $region34: #{tpu_custom_call.1} parent=31 // pred_check_branch
          %207 = sbr.rel (%p205) target = $region36
        $region35: #{tpu_custom_call.1} parent=31 // pred_region
          %208 = dma.done %s201, 768
        $region36: #{tpu_custom_call.1} parent=31 // pred_fallthru
          _
        // Predicated region
        $region37: #{tpu_custom_call.1} parent=31 // pred_check
          %p209 = pneg %p80
        $region38: #{tpu_custom_call.1} parent=31 // pred_check_branch
          %211 = sbr.rel (%p209) target = $region40
        $region39: #{tpu_custom_call.1} parent=31 // pred_region
          %212 = dma.done [#allocation6], 12288
        $region40: #{tpu_custom_call.1} parent=31 // pred_fallthru
          _
        %s213 = sand.u32 %s41, 1
        %s214 = scalar_lea.sflag [#allocation3], %s213
        %s215 = sand.u32 %s41, 1
        %s216 = smul.addr %s215, 48
        %s217 = scalar_lea.vmem [#allocation2], %s216
        %p218 = pneg %p54
        %p219 = pneg %p51
        %p220 = pneg %p80
        %p221 = pneg %p77
        %p222 = scmp.lt.s32.totalorder %s26, 0
        %s223 = scalar_select %p222, %s26, 0
        %s224 = scalar_lea.vmem %s2, %s223
        %p225 = pneg %p106
        %p226 = pneg %p103
        %p227 = pneg %p134
        %p228 = pneg %p131
        %s229 = sand.u32 %s121, 1
        %s230 = scalar_lea.sflag [#allocation4], %s229
        %s231 = sand.u32 %s121, 1
        %s232 = smul.addr %s231, 8
        %s233 = scalar_lea.vmem [#allocation7], %s232
        %p234 = scmp.lt.s32.totalorder %s26, 0
        %s235 = scalar_select %p234, %s26, 0
        %s236 = scalar_lea.vmem %s2, %s235
        %v237 = vld [vmem:[%s204] sm:$0xff]
        %v238 = vld [vmem:[%s204 + $0x8] sm:$0xff]
        %v239 = vld [vmem:[%s204 + $0x10] sm:$0xff]
        %v240 = vld [vmem:[%s204 + $0x18] sm:$0xff]
        %v241 = vld [vmem:[%s204 + $0x20] sm:$0xff]
        %v242 = vld [vmem:[%s204 + $0x28] sm:$0xff]
        %v243 = vld [vmem:[#allocation5] sm:$0xff]
        %v244 = vld [vmem:[#allocation5 + $0x8] sm:$0xff]
        %v245 = vld [vmem:[#allocation5 + $0x10] sm:$0xff]
        %v246 = vld [vmem:[#allocation5 + $0x18] sm:$0xff]
        %v247 = vld [vmem:[#allocation5 + $0x20] sm:$0xff]
        %v248 = vld [vmem:[#allocation5 + $0x28] sm:$0xff]
        %v249 = vld [vmem:[#allocation5 + $0x30] sm:$0xff]
        %v250 = vld [vmem:[#allocation5 + $0x38] sm:$0xff]
        %v251 = vld [vmem:[#allocation5 + $0x40] sm:$0xff]
        %v252 = vld [vmem:[#allocation5 + $0x48] sm:$0xff]
        %v253 = vld [vmem:[#allocation5 + $0x50] sm:$0xff]
        %v254 = vld [vmem:[#allocation5 + $0x58] sm:$0xff]
        %v255 = vld [vmem:[#allocation5 + $0x60] sm:$0xff]
        %v256 = vld [vmem:[#allocation5 + $0x68] sm:$0xff]
        %v257 = vld [vmem:[#allocation5 + $0x70] sm:$0xff]
        %v258 = vld [vmem:[#allocation5 + $0x78] sm:$0xff]
        %v259 = vld [vmem:[#allocation5 + $0x80] sm:$0xff]
        %v260 = vld [vmem:[#allocation5 + $0x88] sm:$0xff]
        %v261 = vld [vmem:[#allocation5 + $0x90] sm:$0xff]
        %v262 = vld [vmem:[#allocation5 + $0x98] sm:$0xff]
        %v263 = vld [vmem:[#allocation5 + $0xa0] sm:$0xff]
        %v264 = vld [vmem:[#allocation5 + $0xa8] sm:$0xff]
        %v265 = vld [vmem:[#allocation5 + $0xb0] sm:$0xff]
        %v266 = vld [vmem:[#allocation5 + $0xb8] sm:$0xff]
        %v267 = vld [vmem:[#allocation5 + $0xc0] sm:$0xff]
        %v268 = vld [vmem:[#allocation5 + $0xc8] sm:$0xff]
        %v269 = vld [vmem:[#allocation5 + $0xd0] sm:$0xff]
        %v270 = vld [vmem:[#allocation5 + $0xd8] sm:$0xff]
        %v271 = vld [vmem:[#allocation5 + $0xe0] sm:$0xff]
        %v272 = vld [vmem:[#allocation5 + $0xe8] sm:$0xff]
        %v273 = vld [vmem:[#allocation5 + $0xf0] sm:$0xff]
        %v274 = vld [vmem:[#allocation5 + $0xf8] sm:$0xff]
        %v275 = vld [vmem:[#allocation5 + $0x100] sm:$0xff]
        %v276 = vld [vmem:[#allocation5 + $0x108] sm:$0xff]
        %v277 = vld [vmem:[#allocation5 + $0x110] sm:$0xff]
        %v278 = vld [vmem:[#allocation5 + $0x118] sm:$0xff]
        %v279 = vld [vmem:[#allocation5 + $0x120] sm:$0xff]
        %v280 = vld [vmem:[#allocation5 + $0x128] sm:$0xff]
        %v281 = vld [vmem:[#allocation5 + $0x130] sm:$0xff]
        %v282 = vld [vmem:[#allocation5 + $0x138] sm:$0xff]
        %v283 = vld [vmem:[#allocation5 + $0x140] sm:$0xff]
        %v284 = vld [vmem:[#allocation5 + $0x148] sm:$0xff]
        %v285 = vld [vmem:[#allocation5 + $0x150] sm:$0xff]
        %v286 = vld [vmem:[#allocation5 + $0x158] sm:$0xff]
        %v287 = vld [vmem:[#allocation5 + $0x160] sm:$0xff]
        %v288 = vld [vmem:[#allocation5 + $0x168] sm:$0xff]
        %v289 = vld [vmem:[#allocation5 + $0x170] sm:$0xff]
        %v290 = vld [vmem:[#allocation5 + $0x178] sm:$0xff]
        %v291 = vld [vmem:[#allocation5 + $0x180] sm:$0xff]
        %v292 = vld [vmem:[#allocation5 + $0x188] sm:$0xff]
        %v293 = vld [vmem:[#allocation5 + $0x190] sm:$0xff]
        %v294 = vld [vmem:[#allocation5 + $0x198] sm:$0xff]
        %v295 = vld [vmem:[#allocation5 + $0x1a0] sm:$0xff]
        %v296 = vld [vmem:[#allocation5 + $0x1a8] sm:$0xff]
        %v297 = vld [vmem:[#allocation5 + $0x1b0] sm:$0xff]
        %v298 = vld [vmem:[#allocation5 + $0x1b8] sm:$0xff]
        %v299 = vld [vmem:[#allocation5 + $0x1c0] sm:$0xff]
        %v300 = vld [vmem:[#allocation5 + $0x1c8] sm:$0xff]
        %v301 = vld [vmem:[#allocation5 + $0x1d0] sm:$0xff]
        %v302 = vld [vmem:[#allocation5 + $0x1d8] sm:$0xff]
        %v303 = vld [vmem:[#allocation5 + $0x1e0] sm:$0xff]
        %v304 = vld [vmem:[#allocation5 + $0x1e8] sm:$0xff]
        %v305 = vld [vmem:[#allocation5 + $0x1f0] sm:$0xff]
        %v306 = vld [vmem:[#allocation5 + $0x1f8] sm:$0xff]
        %v307 = vld [vmem:[#allocation5 + $0x200] sm:$0xff]
        %v308 = vld [vmem:[#allocation5 + $0x208] sm:$0xff]
        %v309 = vld [vmem:[#allocation5 + $0x210] sm:$0xff]
        %v310 = vld [vmem:[#allocation5 + $0x218] sm:$0xff]
        %v311 = vld [vmem:[#allocation5 + $0x220] sm:$0xff]
        %v312 = vld [vmem:[#allocation5 + $0x228] sm:$0xff]
        %v313 = vld [vmem:[#allocation5 + $0x230] sm:$0xff]
        %v314 = vld [vmem:[#allocation5 + $0x238] sm:$0xff]
        %v315 = vld [vmem:[#allocation5 + $0x240] sm:$0xff]
        %v316 = vld [vmem:[#allocation5 + $0x248] sm:$0xff]
        %v317 = vld [vmem:[#allocation5 + $0x250] sm:$0xff]
        %v318 = vld [vmem:[#allocation5 + $0x258] sm:$0xff]
        %v319 = vld [vmem:[#allocation5 + $0x260] sm:$0xff]
        %v320 = vld [vmem:[#allocation5 + $0x268] sm:$0xff]
        %v321 = vld [vmem:[#allocation5 + $0x270] sm:$0xff]
        %v322 = vld [vmem:[#allocation5 + $0x278] sm:$0xff]
        %v323 = vld [vmem:[#allocation5 + $0x280] sm:$0xff]
        %v324 = vld [vmem:[#allocation5 + $0x288] sm:$0xff]
        %v325 = vld [vmem:[#allocation5 + $0x290] sm:$0xff]
        %v326 = vld [vmem:[#allocation5 + $0x298] sm:$0xff]
        %v327 = vld [vmem:[#allocation5 + $0x2a0] sm:$0xff]
        %v328 = vld [vmem:[#allocation5 + $0x2a8] sm:$0xff]
        %v329 = vld [vmem:[#allocation5 + $0x2b0] sm:$0xff]
        %v330 = vld [vmem:[#allocation5 + $0x2b8] sm:$0xff]
        %v331 = vld [vmem:[#allocation5 + $0x2c0] sm:$0xff]
        %v332 = vld [vmem:[#allocation5 + $0x2c8] sm:$0xff]
        %v333 = vld [vmem:[#allocation5 + $0x2d0] sm:$0xff]
        %v334 = vld [vmem:[#allocation5 + $0x2d8] sm:$0xff]
        %v335 = vld [vmem:[#allocation5 + $0x2e0] sm:$0xff]
        %v336 = vld [vmem:[#allocation5 + $0x2e8] sm:$0xff]
        %v337 = vld [vmem:[#allocation5 + $0x2f0] sm:$0xff]
        %v338 = vld [vmem:[#allocation5 + $0x2f8] sm:$0xff]
        %v339 = vld [vmem:[%s236] sm:$0x1]
        %v341 = vlaneseq
        %v342 = vshrl.u32 %v341, 7
        %v343 = vsub.s32 0, %v342
        %v344 = vrot.slane %v339, %v343
        %346 = vmatprep.subr.mxu0 0.0
        %347 = vmatpush1.msra.mxu0 %v243
        %348 = vmatprep.subr.mxu0 0.0
        %349 = vmatpush1.msra.mxu0 %v244
        %350 = vmatprep.subr.mxu0 0.0
        %351 = vmatpush1.msra.mxu0 %v245
        %352 = vmatprep.subr.mxu0 0.0
        %353 = vmatpush1.msra.mxu0 %v246
        %354 = vmatprep.subr.mxu0 0.0
        %355 = vmatpush1.msra.mxu0 %v247
        %356 = vmatprep.subr.mxu0 0.0
        %357 = vmatpush1.msra.mxu0 %v248
        %358 = vmatprep.subr.mxu0 0.0
        %359 = vmatpush1.msra.mxu0 %v249
        %360 = vmatprep.subr.mxu0 0.0
        %361 = vmatpush1.msra.mxu0 %v250
        %362 = vmatprep.subr.mxu0 0.0
        %363 = vmatpush1.msra.mxu0 %v251
        %364 = vmatprep.subr.mxu0 0.0
        %365 = vmatpush1.msra.mxu0 %v252
        %366 = vmatprep.subr.mxu0 0.0
        %367 = vmatpush1.msra.mxu0 %v253
        %368 = vmatprep.subr.mxu0 0.0
        %369 = vmatpush1.msra.mxu0 %v254
        %370 = vmatprep.subr.mxu0 0.0
        %371 = vmatpush1.msra.mxu0 %v255
        %372 = vmatprep.subr.mxu0 0.0
        %373 = vmatpush1.msra.mxu0 %v256
        %374 = vmatprep.subr.mxu0 0.0
        %375 = vmatpush1.msra.mxu0 %v257
        %376 = vmatprep.subr.mxu0 0.0
        %377 = vmatpush1.msra.mxu0 %v258
        %378 = vmatprep.subr.mxu0 0.0
        %379 = vmatpush1.msra.mxu0 %v259
        %380 = vmatprep.subr.mxu0 0.0
        %381 = vmatpush1.msra.mxu0 %v260
        %382 = vmatprep.subr.mxu0 0.0
        %383 = vmatpush1.msra.mxu0 %v261
        %384 = vmatprep.subr.mxu0 0.0
        %385 = vmatpush1.msra.mxu0 %v262
        %386 = vmatprep.subr.mxu0 0.0
        %387 = vmatpush1.msra.mxu0 %v263
        %388 = vmatprep.subr.mxu0 0.0
        %389 = vmatpush1.msra.mxu0 %v264
        %390 = vmatprep.subr.mxu0 0.0
        %391 = vmatpush1.msra.mxu0 %v265
        %392 = vmatprep.subr.mxu0 0.0
        %393 = vmatpush1.msra.mxu0 %v266
        %394 = vmatprep.subr.mxu0 0.0
        %395 = vmatpush1.msra.mxu0 %v267
        %396 = vmatprep.subr.mxu0 0.0
        %397 = vmatpush1.msra.mxu0 %v268
        %398 = vmatprep.subr.mxu0 0.0
        %399 = vmatpush1.msra.mxu0 %v269
        %400 = vmatprep.subr.mxu0 0.0
        %401 = vmatpush1.msra.mxu0 %v270
        %402 = vmatprep.subr.mxu0 0.0
        %403 = vmatpush1.msra.mxu0 %v271
        %404 = vmatprep.subr.mxu0 0.0
        %405 = vmatpush1.msra.mxu0 %v272
        %406 = vmatprep.subr.mxu0 0.0
        %407 = vmatpush1.msra.mxu0 %v273
        %408 = vmatprep.subr.mxu0 0.0
        %409 = vmatpush1.msra.mxu0 %v274
        %410 = vmatprep.mubr.f32.mxu0 %v238
        %411 = vmatmul.mubr.f32.gmra.mrb[0].mxu0 %v237
        %v412 = vpop.f32.mrb[0].mxu0
        %v413 = vadd.f32 %v344, %v412
        %v414 = vpop.f32.mrb[0].mxu0
        %415 = vdwg.mxu0
        %416 = vmatprep.subr.mxu0 0.0
        %417 = vmatpush1.msra.mxu0 %v275
        %418 = vmatprep.subr.mxu0 0.0
        %419 = vmatpush1.msra.mxu0 %v276
        %420 = vmatprep.subr.mxu0 0.0
        %421 = vmatpush1.msra.mxu0 %v277
        %422 = vmatprep.subr.mxu0 0.0
        %423 = vmatpush1.msra.mxu0 %v278
        %424 = vmatprep.subr.mxu0 0.0
        %425 = vmatpush1.msra.mxu0 %v279
        %426 = vmatprep.subr.mxu0 0.0
        %427 = vmatpush1.msra.mxu0 %v280
        %428 = vmatprep.subr.mxu0 0.0
        %429 = vmatpush1.msra.mxu0 %v281
        %430 = vmatprep.subr.mxu0 0.0
        %431 = vmatpush1.msra.mxu0 %v282
        %432 = vmatprep.subr.mxu0 0.0
        %433 = vmatpush1.msra.mxu0 %v283
        %434 = vmatprep.subr.mxu0 0.0
        %435 = vmatpush1.msra.mxu0 %v284
        %436 = vmatprep.subr.mxu0 0.0
        %437 = vmatpush1.msra.mxu0 %v285
        %438 = vmatprep.subr.mxu0 0.0
        %439 = vmatpush1.msra.mxu0 %v286
        %440 = vmatprep.subr.mxu0 0.0
        %441 = vmatpush1.msra.mxu0 %v287
        %442 = vmatprep.subr.mxu0 0.0
        %443 = vmatpush1.msra.mxu0 %v288
        %444 = vmatprep.subr.mxu0 0.0
        %445 = vmatpush1.msra.mxu0 %v289
        %446 = vmatprep.subr.mxu0 0.0
        %447 = vmatpush1.msra.mxu0 %v290
        %448 = vmatprep.subr.mxu0 0.0
        %449 = vmatpush1.msra.mxu0 %v291
        %450 = vmatprep.subr.mxu0 0.0
        %451 = vmatpush1.msra.mxu0 %v292
        %452 = vmatprep.subr.mxu0 0.0
        %453 = vmatpush1.msra.mxu0 %v293
        %454 = vmatprep.subr.mxu0 0.0
        %455 = vmatpush1.msra.mxu0 %v294
        %456 = vmatprep.subr.mxu0 0.0
        %457 = vmatpush1.msra.mxu0 %v295
        %458 = vmatprep.subr.mxu0 0.0
        %459 = vmatpush1.msra.mxu0 %v296
        %460 = vmatprep.subr.mxu0 0.0
        %461 = vmatpush1.msra.mxu0 %v297
        %462 = vmatprep.subr.mxu0 0.0
        %463 = vmatpush1.msra.mxu0 %v298
        %464 = vmatprep.subr.mxu0 0.0
        %465 = vmatpush1.msra.mxu0 %v299
        %466 = vmatprep.subr.mxu0 0.0
        %467 = vmatpush1.msra.mxu0 %v300
        %468 = vmatprep.subr.mxu0 0.0
        %469 = vmatpush1.msra.mxu0 %v301
        %470 = vmatprep.subr.mxu0 0.0
        %471 = vmatpush1.msra.mxu0 %v302
        %472 = vmatprep.subr.mxu0 0.0
        %473 = vmatpush1.msra.mxu0 %v303
        %474 = vmatprep.subr.mxu0 0.0
        %475 = vmatpush1.msra.mxu0 %v304
        %476 = vmatprep.subr.mxu0 0.0
        %477 = vmatpush1.msra.mxu0 %v305
        %478 = vmatprep.subr.mxu0 0.0
        %479 = vmatpush1.msra.mxu0 %v306
        %480 = vmatprep.mubr.f32.mxu0 %v240
        %481 = vmatmul.mubr.f32.gmra.mrb[0].mxu0 %v239
        %v482 = vpop.f32.mrb[0].mxu0
        %v483 = vadd.f32 %v413, %v482
        %v484 = vpop.f32.mrb[0].mxu0
        %485 = vdwg.mxu0
        %486 = vmatprep.subr.mxu0 0.0
        %487 = vmatpush1.msra.mxu0 %v307
        %488 = vmatprep.subr.mxu0 0.0
        %489 = vmatpush1.msra.mxu0 %v308
        %490 = vmatprep.subr.mxu0 0.0
        %491 = vmatpush1.msra.mxu0 %v309
        %492 = vmatprep.subr.mxu0 0.0
        %493 = vmatpush1.msra.mxu0 %v310
        %494 = vmatprep.subr.mxu0 0.0
        %495 = vmatpush1.msra.mxu0 %v311
        %496 = vmatprep.subr.mxu0 0.0
        %497 = vmatpush1.msra.mxu0 %v312
        %498 = vmatprep.subr.mxu0 0.0
        %499 = vmatpush1.msra.mxu0 %v313
        %500 = vmatprep.subr.mxu0 0.0
        %501 = vmatpush1.msra.mxu0 %v314
        %502 = vmatprep.subr.mxu0 0.0
        %503 = vmatpush1.msra.mxu0 %v315
        %504 = vmatprep.subr.mxu0 0.0
        %505 = vmatpush1.msra.mxu0 %v316
        %506 = vmatprep.subr.mxu0 0.0
        %507 = vmatpush1.msra.mxu0 %v317
        %508 = vmatprep.subr.mxu0 0.0
        %509 = vmatpush1.msra.mxu0 %v318
        %510 = vmatprep.subr.mxu0 0.0
        %511 = vmatpush1.msra.mxu0 %v319
        %512 = vmatprep.subr.mxu0 0.0
        %513 = vmatpush1.msra.mxu0 %v320
        %514 = vmatprep.subr.mxu0 0.0
        %515 = vmatpush1.msra.mxu0 %v321
        %516 = vmatprep.subr.mxu0 0.0
        %517 = vmatpush1.msra.mxu0 %v322
        %518 = vmatprep.subr.mxu0 0.0
        %519 = vmatpush1.msra.mxu0 %v323
        %520 = vmatprep.subr.mxu0 0.0
        %521 = vmatpush1.msra.mxu0 %v324
        %522 = vmatprep.subr.mxu0 0.0
        %523 = vmatpush1.msra.mxu0 %v325
        %524 = vmatprep.subr.mxu0 0.0
        %525 = vmatpush1.msra.mxu0 %v326
        %526 = vmatprep.subr.mxu0 0.0
        %527 = vmatpush1.msra.mxu0 %v327
        %528 = vmatprep.subr.mxu0 0.0
        %529 = vmatpush1.msra.mxu0 %v328
        %530 = vmatprep.subr.mxu0 0.0
        %531 = vmatpush1.msra.mxu0 %v329
        %532 = vmatprep.subr.mxu0 0.0
        %533 = vmatpush1.msra.mxu0 %v330
        %534 = vmatprep.subr.mxu0 0.0
        %535 = vmatpush1.msra.mxu0 %v331
        %536 = vmatprep.subr.mxu0 0.0
        %537 = vmatpush1.msra.mxu0 %v332
        %538 = vmatprep.subr.mxu0 0.0
        %539 = vmatpush1.msra.mxu0 %v333
        %540 = vmatprep.subr.mxu0 0.0
        %541 = vmatpush1.msra.mxu0 %v334
        %542 = vmatprep.subr.mxu0 0.0
        %543 = vmatpush1.msra.mxu0 %v335
        %544 = vmatprep.subr.mxu0 0.0
        %545 = vmatpush1.msra.mxu0 %v336
        %546 = vmatprep.subr.mxu0 0.0
        %547 = vmatpush1.msra.mxu0 %v337
        %548 = vmatprep.subr.mxu0 0.0
        %549 = vmatpush1.msra.mxu0 %v338
        %550 = vmatprep.mubr.f32.mxu0 %v242
        %551 = vmatmul.mubr.f32.gmra.mrb[0].mxu0 %v241
        %v552 = vpop.f32.mrb[0].mxu0
        %v553 = vadd.f32 %v483, %v552
        %v554 = vpop.f32.mrb[0].mxu0
        %555 = vdwg.mxu0
        %556 = vst [vmem:[%s233] sm:$0xff] %v553
        %s557 = sand.u32 %s121, 1
        %s558 = scalar_lea.sflag [#allocation4], %s557
        %s559 = sand.u32 %s121, 1
        %s560 = smul.addr %s559, 8
        %s561 = scalar_lea.vmem [#allocation7], %s560
        // Predicated region
        $region41: #{tpu_custom_call.1} parent=31 // pred_check
          %p562 = pneg %p131
        $region42: #{tpu_custom_call.1} parent=31 // pred_check_branch
          %564 = sbr.rel (%p562) target = $region44
        $region43: #{tpu_custom_call.1} parent=31 // pred_region
          %s566 = ssub.s32 128, 128
          %567 = vsyncadd %s558, %s566
          %s568 = sadd.s32 %s26, %s25
          %s569 = smul.addr %s568, 128
          %s570 = scalar_lea.hbm %s3, %s569
          %s572 = sshll.u32 %s561, 4
          %s573 = int_to_ptr.vmem [resolvable:$true] %s572
          %575 = dma.vmem_to_hbm [thread:$0]  %s573, 128, %s570, %s558
        $region44: #{tpu_custom_call.1} parent=31 // pred_fallthru
          _
      $region32: #{tpu_custom_call.1} parent=5 // pred_fallthru
        _
      %p576 = scmp.le.s32.totalorder 2, %s16
      // Predicated region
      $region45: #{tpu_custom_call.1} parent=5 // pred_check
        %p577 = pneg %p576
      $region46: #{tpu_custom_call.1} parent=5 // pred_check_branch
        %579 = sbr.rel (%p577) target = $region48
      $region47: #{tpu_custom_call.1} parent=5 // pred_region
        %s580 = ssub.s32 %s16, 2
        // Predicated region
        $region49: #{tpu_custom_call.1} parent=47 // pred_check
          %p581 = pneg %p137
        $region50: #{tpu_custom_call.1} parent=47 // pred_check_branch
          %583 = sbr.rel (%p581) target = $region52
        $region51: #{tpu_custom_call.1} parent=47 // pred_region
          %s584 = sand.u32 %s122, 1
          %s585 = scalar_lea.sflag [#allocation4], %s584
          %s586 = sand.u32 %s122, 1
          %s587 = smul.addr %s586, 8
          %s588 = scalar_lea.vmem [#allocation7], %s587
          %589 = dma.done %s585, 128
        $region52: #{tpu_custom_call.1} parent=47 // pred_fallthru
          _
      $region48: #{tpu_custom_call.1} parent=5 // pred_fallthru
        _
    $region6: #{tpu_custom_call.1} parent=1 // loop_footer
      %s20 = sadd.s32 1, %s16
    $region7: #{tpu_custom_call.1} parent=1 // loop_footer_branch
      %15 = sbr.rel target = $region3
    $region8: #{tpu_custom_call.1} parent=1 // loop_exit
      _
    %590 = vsyncpa [#allocation3], 1
    %s591 = scalar_lea.sflag [#allocation3], 1
    %592 = vsyncpa %s591, 1
    %593 = vsyncpa [#allocation6], 1
    %594 = vsyncpa [#allocation4], 1
    %s595 = scalar_lea.sflag [#allocation4], 1
    %596 = vsyncpa %s595, 1

</llo_original>
